<compile_context>
chip_gen: v7x
topology: tpu7x:2x2x1
jax: 0.10.0
libtpu: 0.0.40
codegen_flags: <defaults>
</compile_context>

<pallas_src>
import functools

import jax
import jax.numpy as jnp
from jax import lax
from jax.experimental import pallas as pl
from jax.experimental.pallas import tpu as pltpu


_VMEM_LIMIT_BYTES = 32 * 1024 * 1024  # safe on v5e/v6e/v7x (see header note)


def _pick_batch_tile(n, per_sample_bytes, target_bytes=2 << 20, min_steps=2):
    """Largest divisor of n keeping the per-step block ~<= target and the grid >= min_steps."""
    cap = max(1, min(n, int(target_bytes // max(per_sample_bytes, 1))))
    if n >= min_steps:
        cap = min(cap, n // min_steps)
    nb = max(1, cap)
    while n % nb:
        nb -= 1
    return nb


# ----------------------------------- kernel bodies -----------------------------------
def _halves_feat_body(x_ref, feat_ref, *, up_len, lw_len):
    """x_ref: (Nb, C, H*W) lane-dense -> feat_ref (Nb, 2, C) per-half channel means."""
    up = x_ref[:, :, pl.ds(0, up_len)].astype(jnp.float32)          # (Nb, C, up_len)
    lw = x_ref[:, :, pl.ds(up_len, lw_len)].astype(jnp.float32)     # (Nb, C, lw_len)
    up_feat = jnp.sum(up, axis=-1) * (1.0 / up_len)                 # one lane reduce each
    lw_feat = jnp.sum(lw, axis=-1) * (1.0 / lw_len)
    feat_ref[:, 0, :] = up_feat.astype(feat_ref.dtype)              # plain row stores
    feat_ref[:, 1, :] = lw_feat.astype(feat_ref.dtype)


def _pool3_body(se_ref, so_ref, pool_ref, *, w_out):
    """Width-only MaxPool2d(kernel=(1,3), stride=(1,2), padding=(0,1)), lane-dense.

    se/so: (Nb, Cs, SH*w_out) even/odd de-interleaved W planes (e[.., r*w_out+j] = s[r, 2j],
    o[.., r*w_out+j] = s[r, 2j+1]).  out[j] = max(s[2j-1], s[2j], s[2j+1]); the previous-odd
    operand is a lane shift of o (roll when 128-aligned), with every per-row j==0 lane
    repaired to s[0] (identity under max, dtype-agnostic).
    """
    e = se_ref[...]
    o = so_ref[...]
    shw = e.shape[-1]
    if shw % 128 == 0:
        prev = pltpu.roll(o, shift=1, axis=e.ndim - 1)               # prev[k] = o[k-1] (XLU)
    else:
        prev = jnp.concatenate([o[..., :1], o[..., :-1]], axis=-1)   # unaligned fallback
    lane = lax.broadcasted_iota(jnp.int32, e.shape, e.ndim - 1)
    prev = jnp.where(lane % w_out == 0, e, prev)                     # per-row j==0 boundary
    pool_ref[...] = jnp.maximum(jnp.maximum(e, o), prev).astype(pool_ref.dtype)


def _fused_kernel(x_ref, se_ref, so_ref, feat_ref, pool_ref, *, up_len, lw_len, w_out):
    _halves_feat_body(x_ref, feat_ref, up_len=up_len, lw_len=lw_len)
    _pool3_body(se_ref, so_ref, pool_ref, w_out=w_out)


def _mean_only_kernel(x_ref, feat_ref, *, up_len, lw_len):
    _halves_feat_body(x_ref, feat_ref, up_len=up_len, lw_len=lw_len)


# ----------------------------------- wrappers -----------------------------------
def _deinterleave_w(s, w_out):
    """Even/odd de-interleave along W, reshaped lane-dense to (N, Cs, SH*w_out).

    TODO(synk): replace with in-kernel lane-strided ref loads to drop this HBM round trip.
    """
    N, Cs, SH, SW = s.shape
    s_even = s[..., 0::2]                       # s[2j]
    s_odd = s[..., 1::2]                        # s[2j+1]
    if SW % 2 == 1:
        # Last window has no right neighbour; duplicate s[SW-1] (identity under max).
        s_odd = jnp.concatenate([s_odd, s[..., -1:]], axis=-1)
    return (s_even.reshape(N, Cs, SH * w_out), s_odd.reshape(N, Cs, SH * w_out))


def halves_mean(x):
    """x: (N, C, H, W) -> (N, 2, C) lane-dense per-half channel means."""
    N, C, H, W = x.shape
    up_len = (H // 2) * W
    lw_len = (H - H // 2) * W
    hw = H * W
    x3 = x.reshape(N, C, hw)                    # metadata-only reshape
    nb = _pick_batch_tile(N, C * hw * x.dtype.itemsize)
    kernel = functools.partial(_mean_only_kernel, up_len=up_len, lw_len=lw_len)
    cost = pl.CostEstimate(
        flops=N * C * hw + 2 * N * C,
        transcendentals=0,
        bytes_accessed=N * C * hw * x.dtype.itemsize + N * 2 * C * x.dtype.itemsize,
    )
    return pl.pallas_call(
        kernel,
        out_shape=jax.ShapeDtypeStruct((N, 2, C), x.dtype),
        grid=(N // nb,),
        in_specs=[pl.BlockSpec((nb, C, hw), lambda n: (n, 0, 0))],
        out_specs=pl.BlockSpec((nb, 2, C), lambda n: (n, 0, 0)),
        compiler_params=pltpu.CompilerParams(
            dimension_semantics=("parallel",),
            vmem_limit_bytes=_VMEM_LIMIT_BYTES,
        ),
        cost_estimate=cost,
    )(x3)


def fused_forward(x, s):
    """One pallas_call per forward: halves-mean feats (N, 2, C) + pooled saliency (N, Cs, SH*w_out)."""
    N, C, H, W = x.shape
    _, Cs, SH, SW = s.shape
    up_len = (H // 2) * W
    lw_len = (H - H // 2) * W
    hw = H * W
    w_out = (SW - 1) // 2 + 1                   # floor((SW + 2 - 3) / 2) + 1
    shw = SH * w_out

    x3 = x.reshape(N, C, hw)                    # metadata-only reshape
    s_even, s_odd = _deinterleave_w(s, w_out)

    per_sample = C * hw * x.dtype.itemsize + 2 * Cs * shw * s.dtype.itemsize
    nb = _pick_batch_tile(N, per_sample)

    kernel = functools.partial(_fused_kernel, up_len=up_len, lw_len=lw_len, w_out=w_out)
    cost = pl.CostEstimate(
        flops=N * C * hw + 2 * N * C + 3 * N * Cs * shw,
        transcendentals=0,
        bytes_accessed=(
            N * C * hw * x.dtype.itemsize
            + 3 * N * Cs * shw * s.dtype.itemsize
            + N * 2 * C * x.dtype.itemsize
        ),
    )
    feats, pooled = pl.pallas_call(
        kernel,
        out_shape=(
            jax.ShapeDtypeStruct((N, 2, C), x.dtype),
            jax.ShapeDtypeStruct((N, Cs, shw), s.dtype),
        ),
        grid=(N // nb,),
        in_specs=[
            pl.BlockSpec((nb, C, hw), lambda n: (n, 0, 0)),
            pl.BlockSpec((nb, Cs, shw), lambda n: (n, 0, 0)),
            pl.BlockSpec((nb, Cs, shw), lambda n: (n, 0, 0)),
        ],
        out_specs=(
            pl.BlockSpec((nb, 2, C), lambda n: (n, 0, 0)),
            pl.BlockSpec((nb, Cs, shw), lambda n: (n, 0, 0)),
        ),
        compiler_params=pltpu.CompilerParams(
            dimension_semantics=("parallel",),
            vmem_limit_bytes=_VMEM_LIMIT_BYTES,
        ),
        cost_estimate=cost,
    )(x3, s_even, s_odd)
    return feats, pooled, w_out


def horizontal_pattern(x, s=None):
    """Mirror of HorizontalPattern.forward(x, s). No learnable parameters."""
    if s is None:
        feats = halves_mean(x)                                   # (N, 2, C)
        return jnp.transpose(feats, (0, 2, 1))[..., None]        # (N, C, 2, 1)

    feats, pooled, w_out = fused_forward(x, s)
    fused = jnp.transpose(feats, (0, 2, 1))[..., None]           # (N, C, 2, 1)

    N, Cs, SH, _ = s.shape
    pooled = pooled.reshape(N, Cs, SH, w_out)                    # metadata-only reshape
    up_sal = pooled[:, :, : SH // 2, :].reshape(N, -1)
    if SH % 2 == 0:
        lw_sal = pooled[:, :, SH // 2 :, :].reshape(N, -1)
    else:
        # torch drops the middle row SH//2 when SH is odd.
        lw_sal = pooled[:, :, SH // 2 + 1 :, :].reshape(N, -1)
    fused_sal = jnp.stack([up_sal, lw_sal], axis=2)[..., None]   # (N, D, 2, 1)
    return fused, fused_sal


# ----------------------------------- reference -----------------------------------
def _reference(x, s):
    H = x.shape[2]
    up_feat = jnp.mean(x[:, :, : H // 2, :], axis=(2, 3))
    lw_feat = jnp.mean(x[:, :, H // 2 :, :], axis=(2, 3))
    fused = jnp.stack([up_feat, lw_feat], axis=2)[..., None]
    if s is None:
        return fused, None
    N, _, SH, _ = s.shape
    pooled = lax.reduce_window(
        s, -jnp.inf, lax.max,
        window_dimensions=(1, 1, 1, 3),
        window_strides=(1, 1, 1, 2),
        padding=((0, 0), (0, 0), (0, 0), (1, 1)),
    )
    up_sal = pooled[:, :, : SH // 2, :].reshape(N, -1)
    if SH % 2 == 0:
        lw_sal = pooled[:, :, SH // 2 :, :].reshape(N, -1)
    else:
        lw_sal = pooled[:, :, SH // 2 + 1 :, :].reshape(N, -1)
    fused_sal = jnp.stack([up_sal, lw_sal], axis=2)[..., None]
    return fused, fused_sal


# ----------------------------------- main -----------------------------------
if __name__ == "__main__":
    key = jax.random.PRNGKey(0)
    kx1, ks1, kx2, ks2 = jax.random.split(key, 4)

    # Case 1: even H / SH / SW (lane width 128 -> roll path), plus the s=None branch.
    N1, C1, H1, W1 = 2, 4, 16, 16
    Cs1, SH1, SW1 = 1, 16, 16
    x1 = jax.random.normal(kx1, (N1, C1, H1, W1), dtype=jnp.float32)
    s1 = jax.random.uniform(ks1, (N1, Cs1, SH1, SW1), dtype=jnp.float32)

    fused1, fused_sal1 = horizontal_pattern(x1, s1)
    jax.block_until_ready(fused1)
    jax.block_until_ready(fused_sal1)
    fused1_only = horizontal_pattern(x1, None)
    jax.block_until_ready(fused1_only)

    fused1_ref, fused_sal1_ref = _reference(x1, s1)
    w_out1 = (SW1 - 1) // 2 + 1
    assert fused1.shape == (N1, C1, 2, 1)
    assert fused1_only.shape == (N1, C1, 2, 1)
    assert fused_sal1.shape == (N1, Cs1 * (SH1 // 2) * w_out1, 2, 1)
    assert jnp.allclose(fused1, fused1_ref, atol=1e-5), "case1 halves-mean mismatch"
    assert jnp.allclose(fused1_only, fused1_ref, atol=1e-5), "case1 halves-mean (s=None) mismatch"
    assert jnp.allclose(fused_sal1, fused_sal1_ref, atol=1e-5), "case1 maxpool mismatch"

    # Case 2: odd H, odd SH (middle-row drop), odd SW, unaligned lane width (concat path).
    N2, C2, H2, W2 = 3, 3, 5, 12
    Cs2, SH2, SW2 = 2, 7, 9
    x2 = jax.random.normal(kx2, (N2, C2, H2, W2), dtype=jnp.float32)
    s2 = jax.random.uniform(ks2, (N2, Cs2, SH2, SW2), dtype=jnp.float32)

    fused2, fused_sal2 = horizontal_pattern(x2, s2)
    jax.block_until_ready(fused2)
    jax.block_until_ready(fused_sal2)

    fused2_ref, fused_sal2_ref = _reference(x2, s2)
    w_out2 = (SW2 - 1) // 2 + 1
    assert fused2.shape == (N2, C2, 2, 1)
    assert fused_sal2.shape == (N2, Cs2 * (SH2 // 2) * w_out2, 2, 1)
    assert jnp.allclose(fused2, fused2_ref, atol=1e-5), "case2 halves-mean mismatch"
    assert jnp.allclose(fused_sal2, fused_sal2_ref, atol=1e-5), "case2 maxpool mismatch"

    print("KERNEL_OK")
</pallas_src>

<mosaic_0001>
module attributes {stable_mosaic.version = 11 : i64} {
  func.func @_fused_kernel(%arg0: i32, %arg1: memref<1x4x256xf32, #tpu.memory_space<vmem>>, %arg2: memref<1x1x128xf32, #tpu.memory_space<vmem>>, %arg3: memref<1x1x128xf32, #tpu.memory_space<vmem>>, %arg4: memref<1x2x4xf32, #tpu.memory_space<vmem>>, %arg5: memref<1x1x128xf32, #tpu.memory_space<vmem>>) attributes {dimension_semantics = [#tpu.dimension_semantics<parallel>], iteration_bounds = array<i64: 2>, scalar_prefetch = 0 : i64, scratch_operands = 0 : i64, tpu.core_type = #tpu.core_type<tc>, window_params = [{transform_indices = @transform_0, window_bounds = array<i64: 1, 4, 256>}, {transform_indices = @transform_1, window_bounds = array<i64: 1, 1, 128>}, {transform_indices = @transform_2, window_bounds = array<i64: 1, 1, 128>}, {transform_indices = @transform_3, window_bounds = array<i64: 1, 2, 4>}, {transform_indices = @transform_4, window_bounds = array<i64: 1, 1, 128>}]} {
    %c0 = arith.constant 0 : index
    %c0_0 = arith.constant 0 : index
    %c0_1 = arith.constant 0 : index
    %0 = vector.load %arg1[%c0, %c0_0, %c0_1] : memref<1x4x256xf32, #tpu.memory_space<vmem>>, vector<1x4x128xf32>
    %c0_2 = arith.constant 0 : index
    %c0_3 = arith.constant 0 : index
    %c128 = arith.constant 128 : index
    %1 = vector.load %arg1[%c0_2, %c0_3, %c128] : memref<1x4x256xf32, #tpu.memory_space<vmem>>, vector<1x4x128xf32>
    %cst = arith.constant dense<0.000000e+00> : vector<1x4xf32>
    %2 = vector.multi_reduction <add>, %0, %cst [2] : vector<1x4x128xf32> to vector<1x4xf32>
    %cst_4 = arith.constant 7.812500e-03 : f32
    %3 = vector.broadcast %cst_4 : f32 to vector<1x4xf32>
    %4 = arith.mulf %2, %3 : vector<1x4xf32>
    %cst_5 = arith.constant dense<0.000000e+00> : vector<1x4xf32>
    %5 = vector.multi_reduction <add>, %1, %cst_5 [2] : vector<1x4x128xf32> to vector<1x4xf32>
    %cst_6 = arith.constant 7.812500e-03 : f32
    %6 = vector.broadcast %cst_6 : f32 to vector<1x4xf32>
    %7 = arith.mulf %5, %6 : vector<1x4xf32>
    %c0_7 = arith.constant 0 : index
    %c0_8 = arith.constant 0 : index
    %c0_9 = arith.constant 0 : index
    %8 = vector.load %arg4[%c0_7, %c0_8, %c0_9] : memref<1x2x4xf32, #tpu.memory_space<vmem>>, vector<1x1x4xf32>
    %9 = vector.shape_cast %8 : vector<1x1x4xf32> to vector<1x4xf32>
    %10 = vector.shape_cast %4 : vector<1x4xf32> to vector<1x1x4xf32>
    tpu.vector_store %arg4[%c0_7, %c0_8, %c0_9], %10 {strides = array<i32>} : memref<1x2x4xf32, #tpu.memory_space<vmem>>, vector<1x1x4xf32>,
    %c0_10 = arith.constant 0 : index
    %c1 = arith.constant 1 : index
    %c0_11 = arith.constant 0 : index
    %11 = vector.load %arg4[%c0_10, %c1, %c0_11] : memref<1x2x4xf32, #tpu.memory_space<vmem>>, vector<1x1x4xf32>
    %12 = vector.shape_cast %11 : vector<1x1x4xf32> to vector<1x4xf32>
    %13 = vector.shape_cast %7 : vector<1x4xf32> to vector<1x1x4xf32>
    tpu.vector_store %arg4[%c0_10, %c1, %c0_11], %13 {strides = array<i32>} : memref<1x2x4xf32, #tpu.memory_space<vmem>>, vector<1x1x4xf32>,
    %c0_12 = arith.constant 0 : index
    %c0_13 = arith.constant 0 : index
    %c0_14 = arith.constant 0 : index
    %14 = vector.load %arg2[%c0_12, %c0_13, %c0_14] : memref<1x1x128xf32, #tpu.memory_space<vmem>>, vector<1x1x128xf32>
    %c0_15 = arith.constant 0 : index
    %c0_16 = arith.constant 0 : index
    %c0_17 = arith.constant 0 : index
    %15 = vector.load %arg3[%c0_15, %c0_16, %c0_17] : memref<1x1x128xf32, #tpu.memory_space<vmem>>, vector<1x1x128xf32>
    %c1_i32 = arith.constant 1 : i32
    %16 = tpu.dynamic_rotate %15 by %c1_i32 dim 2 : vector<1x1x128xf32>, i32 -> vector<1x1x128xf32>
    %17 = tpu.iota {dimensions = array<i32: 2>} : vector<1x1x128xi32>
    %c8_i32 = arith.constant 8 : i32
    %c0_i32 = arith.constant 0 : i32
    %18 = arith.cmpi eq, %c8_i32, %c0_i32 : i32
    %c1_i32_18 = arith.constant 1 : i32
    %19 = arith.select %18, %c1_i32_18, %c8_i32 : i32
    %20 = vector.broadcast %19 : i32 to vector<1x1x128xi32>
    %21 = arith.remsi %17, %20 : vector<1x1x128xi32>
    %c0_i32_19 = arith.constant 0 : i32
    %22 = vector.broadcast %c0_i32_19 : i32 to vector<1x1x128xi32>
    %23 = arith.cmpi ne, %21, %22 : vector<1x1x128xi32>
    %c0_i32_20 = arith.constant 0 : i32
    %24 = vector.broadcast %c0_i32_20 : i32 to vector<1x1x128xi32>
    %25 = arith.cmpi slt, %21, %24 : vector<1x1x128xi32>
    %c0_i32_21 = arith.constant 0 : i32
    %26 = arith.cmpi slt, %19, %c0_i32_21 : i32
    %27 = vector.broadcast %26 : i1 to vector<1x1x128xi1>
    %28 = vector.broadcast %27 : vector<1x1x128xi1> to vector<1x1x128xi1>
    %29 = arith.xori %25, %28 : vector<1x1x128xi1>
    %30 = arith.andi %29, %23 : vector<1x1x128xi1>
    %31 = vector.broadcast %19 : i32 to vector<1x1x128xi32>
    %32 = arith.addi %21, %31 : vector<1x1x128xi32>
    %33 = arith.select %30, %32, %21 : vector<1x1x128xi1>, vector<1x1x128xi32>
    %c0_i32_22 = arith.constant 0 : i32
    %34 = vector.broadcast %c0_i32_22 : i32 to vector<1x1x128xi32>
    %35 = arith.cmpi eq, %33, %34 : vector<1x1x128xi32>
    %36 = arith.select %35, %14, %16 : vector<1x1x128xi1>, vector<1x1x128xf32>
    %37 = arith.maximumf %14, %15 : vector<1x1x128xf32>
    %38 = arith.maximumf %37, %36 : vector<1x1x128xf32>
    %c0_23 = arith.constant 0 : index
    %c0_24 = arith.constant 0 : index
    %c0_25 = arith.constant 0 : index
    %39 = vector.load %arg5[%c0_23, %c0_24, %c0_25] : memref<1x1x128xf32, #tpu.memory_space<vmem>>, vector<1x1x128xf32>
    tpu.vector_store %arg5[%c0_23, %c0_24, %c0_25], %38 {strides = array<i32>} : memref<1x1x128xf32, #tpu.memory_space<vmem>>, vector<1x1x128xf32>,
    return
  }
  func.func @transform_0(%arg0: i32) -> (i32, i32, i32) {
    %c0_i32 = arith.constant 0 : i32
    %c0_i32_0 = arith.constant 0 : i32
    %c0_i32_1 = arith.constant 0 : i32
    return %arg0, %c0_i32, %c0_i32_0 : i32, i32, i32
  }
  func.func @transform_1(%arg0: i32) -> (i32, i32, i32) {
    %c0_i32 = arith.constant 0 : i32
    %c0_i32_0 = arith.constant 0 : i32
    %c0_i32_1 = arith.constant 0 : i32
    return %arg0, %c0_i32, %c0_i32_0 : i32, i32, i32
  }
  func.func @transform_2(%arg0: i32) -> (i32, i32, i32) {
    %c0_i32 = arith.constant 0 : i32
    %c0_i32_0 = arith.constant 0 : i32
    %c0_i32_1 = arith.constant 0 : i32
    return %arg0, %c0_i32, %c0_i32_0 : i32, i32, i32
  }
  func.func @transform_3(%arg0: i32) -> (i32, i32, i32) {
    %c0_i32 = arith.constant 0 : i32
    %c0_i32_0 = arith.constant 0 : i32
    %c0_i32_1 = arith.constant 0 : i32
    return %arg0, %c0_i32, %c0_i32_0 : i32, i32, i32
  }
  func.func @transform_4(%arg0: i32) -> (i32, i32, i32) {
    %c0_i32 = arith.constant 0 : i32
    %c0_i32_0 = arith.constant 0 : i32
    %c0_i32_1 = arith.constant 0 : i32
    return %arg0, %c0_i32, %c0_i32_0 : i32, i32, i32
  }
}

</mosaic_0001>

<llo_original>
// kernel: tpu_custom_call.1
$region0: #{tpu_custom_call.1}
  #allocation0 [shape = 'u32[]', space=smem, size = 0x4, offset = 0x4, fixed_abs, tag = 'smem constant byte address 0x4 - core index']
  #allocation1 [shape = 'u32[144,128]{1,0:T(1,128)}', space=vmem, size = 0x12000, scoped, tag = 'internal scratch']
  %s0 = inlined_call_operand.hbm [shape: f32[2,4,256], index: 0, kind: input, shape index: {}]
  %s1 = inlined_call_operand.vmem [shape: f32[2,1,128], index: 1, kind: input, shape index: {}]
  %s2 = inlined_call_operand.vmem [shape: f32[2,1,128], index: 2, kind: input, shape index: {}]
  %s3 = inlined_call_operand.hbm [shape: f32[2,2,4], index: 3, kind: output, shape index: {0}]
  %s4 = inlined_call_operand.hbm [shape: f32[2,1,128], index: 4, kind: output, shape index: {1}]
  %5 = xla_tuple %s3, %s4
  %s6 = sld [smem:[#allocation0]]
  $region57: #{tpu_custom_call.1} parent=0
    _
  %s8 = ssub.s32 1, %s6
  %s9 = scalar_select 0, %s8, %s6
  $region1: #{tpu_custom_call.1} parent=0
    #allocation2 [shape = 'u8[8192]{0}', space=vmem, size = 0x2000, scoped, tag = 'input window, operand 0']
    #allocation3 [shape = 's32[2]{0}', space=sflag, size = 0x8, scoped, tag = 'scoped memory for tpu_custom_call.1']
    #allocation4 [shape = 's32[2]{0}', space=sflag, size = 0x8, scoped, tag = 'scoped memory for tpu_custom_call.1']
    #allocation5 [shape = 'u8[2048]{0}', space=vmem, size = 0x800, scoped, tag = 'output window, operand 0']
    #allocation6 [shape = 'u8[1024]{0}', space=vmem, size = 0x400, scoped, tag = 'output window, operand 1']
    #allocation7 [shape = 's32[2]{0}', space=sflag, size = 0x8, scoped, tag = 'scoped memory for tpu_custom_call.1']
    %10 = vsyncpa [#allocation3], 0
    %s11 = scalar_lea.sflag [#allocation3], 1
    %12 = vsyncpa %s11, 0
    %13 = vsyncpa [#allocation4], 0
    %s14 = scalar_lea.sflag [#allocation4], 1
    %15 = vsyncpa %s14, 0
    %16 = vsyncpa [#allocation7], 0
    %s17 = scalar_lea.sflag [#allocation7], 1
    %18 = vsyncpa %s17, 0
    loop: start=0, step=1, limit=4
    $region2: #{tpu_custom_call.1} parent=1 // loop_pre_header
      _
    $region3: #{tpu_custom_call.1} parent=1 // loop_header
      %s20 = sphi 0, %s24
      %p21 = scmp.ge.s32.totalorder %s20, 4
      %s30 = sphi 0, %s32
      %s33 = sphi 0, %s30
      %s34 = sphi 0, %s33
      %s50 = sphi 0, %s34
      %s56 = sphi 0, %s58
      %s59 = sphi 0, %s56
      %s60 = sphi 0, %s59
      %s76 = sphi 0, %s60
      %s82 = sphi 0, %s84
      %s85 = sphi 0, %s82
      %s86 = sphi 0, %s85
      %s102 = sphi 0, %s86
      %s108 = sphi 0, %s110
      %s111 = sphi 0, %s108
      %s112 = sphi 0, %s111
      %s128 = sphi 0, %s112
      %s134 = sphi 0, %s136
      %s137 = sphi 0, %s134
      %s138 = sphi 0, %s137
      %s154 = sphi 0, %s138
    $region4: #{tpu_custom_call.1} parent=1 // loop_header_branch
      %23 = sbr.rel (%p21) target = $region8
    $region5: #{tpu_custom_call.1} parent=1 // loop_body
      %s25 = ssub.s32 %s20, 1
      %s26 = ssub.s32 %s20, 2
      %s27 = sadd.s32 %s20, 1
      %s28 = ssub.s32 %s20, %s27
      %p29 = scmp.eq.s32.totalorder %s28, 0
      %s31 = sadd.s32 %s30, 1
      %s32 = scalar_select %p29, %s30, %s31
      %p35 = pneg %p29
      %p36 = scmp.eq.s32.totalorder %s20, 1
      %p37 = por %p35, %p36
      %p38 = scmp.ne.s32.totalorder %s30, %s33
      %p39 = scmp.eq.s32.totalorder %s20, 0
      %p40 = por %p38, %p39
      %p41 = scmp.ne.s32.totalorder %s30, %s33
      %p42 = scmp.eq.s32.totalorder %s25, 1
      %p43 = por %p41, %p42
      %p44 = scmp.ne.s32.totalorder %s33, %s34
      %p45 = scmp.eq.s32.totalorder %s25, 0
      %p46 = por %p44, %p45
      %p47 = scmp.ne.s32.totalorder %s33, %s34
      %p48 = scmp.eq.s32.totalorder %s26, 1
      %p49 = por %p47, %p48
      %p51 = scmp.ne.s32.totalorder %s34, %s50
      %p52 = scmp.eq.s32.totalorder %s26, 0
      %p53 = por %p51, %p52
      %s54 = ssub.s32 %s20, %s27
      %p55 = scmp.eq.s32.totalorder %s54, 0
      %s57 = sadd.s32 %s56, 1
      %s58 = scalar_select %p55, %s56, %s57
      %p61 = pneg %p55
      %p62 = scmp.eq.s32.totalorder %s20, 1
      %p63 = por %p61, %p62
      %p64 = scmp.ne.s32.totalorder %s56, %s59
      %p65 = scmp.eq.s32.totalorder %s20, 0
      %p66 = por %p64, %p65
      %p67 = scmp.ne.s32.totalorder %s56, %s59
      %p68 = scmp.eq.s32.totalorder %s25, 1
      %p69 = por %p67, %p68
      %p70 = scmp.ne.s32.totalorder %s59, %s60
      %p71 = scmp.eq.s32.totalorder %s25, 0
      %p72 = por %p70, %p71
      %p73 = scmp.ne.s32.totalorder %s59, %s60
      %p74 = scmp.eq.s32.totalorder %s26, 1
      %p75 = por %p73, %p74
      %p77 = scmp.ne.s32.totalorder %s60, %s76
      %p78 = scmp.eq.s32.totalorder %s26, 0
      %p79 = por %p77, %p78
      %s80 = ssub.s32 %s20, %s27
      %p81 = scmp.eq.s32.totalorder %s80, 0
      %s83 = sadd.s32 %s82, 1
      %s84 = scalar_select %p81, %s82, %s83
      %p87 = pneg %p81
      %p88 = scmp.eq.s32.totalorder %s20, 1
      %p89 = por %p87, %p88
      %p90 = scmp.ne.s32.totalorder %s82, %s85
      %p91 = scmp.eq.s32.totalorder %s20, 0
      %p92 = por %p90, %p91
      %p93 = scmp.ne.s32.totalorder %s82, %s85
      %p94 = scmp.eq.s32.totalorder %s25, 1
      %p95 = por %p93, %p94
      %p96 = scmp.ne.s32.totalorder %s85, %s86
      %p97 = scmp.eq.s32.totalorder %s25, 0
      %p98 = por %p96, %p97
      %p99 = scmp.ne.s32.totalorder %s85, %s86
      %p100 = scmp.eq.s32.totalorder %s26, 1
      %p101 = por %p99, %p100
      %p103 = scmp.ne.s32.totalorder %s86, %s102
      %p104 = scmp.eq.s32.totalorder %s26, 0
      %p105 = por %p103, %p104
      %s106 = ssub.s32 %s20, %s27
      %p107 = scmp.eq.s32.totalorder %s106, 0
      %s109 = sadd.s32 %s108, 1
      %s110 = scalar_select %p107, %s108, %s109
      %p113 = pneg %p107
      %p114 = scmp.eq.s32.totalorder %s20, 1
      %p115 = por %p113, %p114
      %p116 = scmp.ne.s32.totalorder %s108, %s111
      %p117 = scmp.eq.s32.totalorder %s20, 0
      %p118 = por %p116, %p117
      %p119 = scmp.ne.s32.totalorder %s108, %s111
      %p120 = scmp.eq.s32.totalorder %s25, 1
      %p121 = por %p119, %p120
      %p122 = scmp.ne.s32.totalorder %s111, %s112
      %p123 = scmp.eq.s32.totalorder %s25, 0
      %p124 = por %p122, %p123
      %p125 = scmp.ne.s32.totalorder %s111, %s112
      %p126 = scmp.eq.s32.totalorder %s26, 1
      %p127 = por %p125, %p126
      %p129 = scmp.ne.s32.totalorder %s112, %s128
      %p130 = scmp.eq.s32.totalorder %s26, 0
      %p131 = por %p129, %p130
      %s132 = ssub.s32 %s20, %s27
      %p133 = scmp.eq.s32.totalorder %s132, 0
      %s135 = sadd.s32 %s134, 1
      %s136 = scalar_select %p133, %s134, %s135
      %p139 = pneg %p133
      %p140 = scmp.eq.s32.totalorder %s20, 1
      %p141 = por %p139, %p140
      %p142 = scmp.ne.s32.totalorder %s134, %s137
      %p143 = scmp.eq.s32.totalorder %s20, 0
      %p144 = por %p142, %p143
      %p145 = scmp.ne.s32.totalorder %s134, %s137
      %p146 = scmp.eq.s32.totalorder %s25, 1
      %p147 = por %p145, %p146
      %p148 = scmp.ne.s32.totalorder %s137, %s138
      %p149 = scmp.eq.s32.totalorder %s25, 0
      %p150 = por %p148, %p149
      %p151 = scmp.ne.s32.totalorder %s137, %s138
      %p152 = scmp.eq.s32.totalorder %s26, 1
      %p153 = por %p151, %p152
      %p155 = scmp.ne.s32.totalorder %s138, %s154
      %p156 = scmp.eq.s32.totalorder %s26, 0
      %p157 = por %p155, %p156
      %p158 = scmp.le.s32.totalorder 1, %s20
      %p159 = scmp.lt.s32.totalorder %s20, 3
      %p160 = pnand %p158, %p159
      %p161 = pneg %p160
      // Predicated region
      $region9: #{tpu_custom_call.1} parent=5 // pred_check
        _
      $region10: #{tpu_custom_call.1} parent=5 // pred_check_branch
        %163 = sbr.rel (%p160) target = $region12
      $region11: #{tpu_custom_call.1} parent=5 // pred_region
        %s164 = ssub.s32 %s20, 1
      $region12: #{tpu_custom_call.1} parent=5 // pred_fallthru
        _
      %p165 = scmp.lt.s32.totalorder %s20, 2
      // Predicated region
      $region13: #{tpu_custom_call.1} parent=5 // pred_check
        %p166 = pneg %p165
      $region14: #{tpu_custom_call.1} parent=5 // pred_check_branch
        %168 = sbr.rel (%p166) target = $region16
      $region15: #{tpu_custom_call.1} parent=5 // pred_region
        // Predicated region
        $region17: #{tpu_custom_call.1} parent=15 // pred_check
          %p169 = pneg %p40
        $region18: #{tpu_custom_call.1} parent=15 // pred_check_branch
          %171 = sbr.rel (%p169) target = $region20
        $region19: #{tpu_custom_call.1} parent=15 // pred_region
          %s172 = sand.u32 %s30, 1
          %s173 = scalar_lea.sflag [#allocation3], %s172
          %s174 = sand.u32 %s30, 1
          %s175 = smul.addr %s174, 8
          %s176 = scalar_lea.vmem [#allocation2], %s175
          %s178 = ssub.s32 128, 128
          %179 = vsyncadd %s173, %s178
          %s180 = smul.addr %s20, 2
          %s181 = smul.addr %s180, 64
          %s182 = scalar_lea.hbm %s0, %s181
          %s184 = sshll.u32 %s176, 4
          %s185 = int_to_ptr.vmem [resolvable:$true] %s184
          %187 = dma.hbm_to_vmem [thread:$0]  %s182, 128, %s185, %s173
        $region20: #{tpu_custom_call.1} parent=15 // pred_fallthru
          _
        // Predicated region
        $region21: #{tpu_custom_call.1} parent=15 // pred_check
          %p188 = pneg %p66
        $region22: #{tpu_custom_call.1} parent=15 // pred_check_branch
          %190 = sbr.rel (%p188) target = $region24
        $region23: #{tpu_custom_call.1} parent=15 // pred_region
          %p191 = scmp.lt.s32.totalorder %s20, 1
          %s192 = scalar_select %p191, %s20, 1
          %s193 = scalar_lea.vmem %s1, %s192
        $region24: #{tpu_custom_call.1} parent=15 // pred_fallthru
          _
        // Predicated region
        $region25: #{tpu_custom_call.1} parent=15 // pred_check
          %p194 = pneg %p92
        $region26: #{tpu_custom_call.1} parent=15 // pred_check_branch
          %196 = sbr.rel (%p194) target = $region28
        $region27: #{tpu_custom_call.1} parent=15 // pred_region
          %p197 = scmp.lt.s32.totalorder %s20, 1
          %s198 = scalar_select %p197, %s20, 1
          %s199 = scalar_lea.vmem %s2, %s198
        $region28: #{tpu_custom_call.1} parent=15 // pred_fallthru
          _
      $region16: #{tpu_custom_call.1} parent=5 // pred_fallthru
        _
      %p200 = scmp.le.s32.totalorder 1, %s20
      %p201 = scmp.lt.s32.totalorder %s20, 3
      %p202 = pnand %p200, %p201
      %p203 = pneg %p202
      // Predicated region
      $region29: #{tpu_custom_call.1} parent=5 // pred_check
        _
      $region30: #{tpu_custom_call.1} parent=5 // pred_check_branch
        %205 = sbr.rel (%p202) target = $region32
      $region31: #{tpu_custom_call.1} parent=5 // pred_region
        %s206 = ssub.s32 %s20, 1
        %s207 = sand.u32 %s33, 1
        %s208 = scalar_lea.sflag [#allocation3], %s207
        %s209 = sand.u32 %s33, 1
        %s210 = smul.addr %s209, 8
        %s211 = scalar_lea.vmem [#allocation2], %s210
        // Predicated region
        $region33: #{tpu_custom_call.1} parent=31 // pred_check
          %p212 = pneg %p46
        $region34: #{tpu_custom_call.1} parent=31 // pred_check_branch
          %214 = sbr.rel (%p212) target = $region36
        $region35: #{tpu_custom_call.1} parent=31 // pred_region
          %215 = dma.done %s208, 128
        $region36: #{tpu_custom_call.1} parent=31 // pred_fallthru
          _
        %s216 = sand.u32 %s33, 1
        %s217 = scalar_lea.sflag [#allocation3], %s216
        %s218 = sand.u32 %s33, 1
        %s219 = smul.addr %s218, 8
        %s220 = scalar_lea.vmem [#allocation2], %s219
        %p221 = pneg %p46
        %p222 = pneg %p43
        %p223 = scmp.lt.s32.totalorder %s25, 1
        %s224 = scalar_select %p223, %s25, 1
        %s225 = scalar_lea.vmem %s1, %s224
        %p226 = pneg %p72
        %p227 = pneg %p69
        %p228 = scmp.lt.s32.totalorder %s25, 1
        %s229 = scalar_select %p228, %s25, 1
        %s230 = scalar_lea.vmem %s2, %s229
        %p231 = pneg %p98
        %p232 = pneg %p95
        %p233 = pneg %p124
        %p234 = pneg %p121
        %s235 = sand.u32 %s111, 1
        %s236 = scalar_lea.sflag [#allocation4], %s235
        %s237 = sand.u32 %s111, 1
        %s238 = smul.addr %s237, 2
        %s239 = scalar_lea.vmem [#allocation5], %s238
        %p240 = pneg %p150
        %p241 = pneg %p147
        %s242 = sand.u32 %s137, 1
        %s243 = scalar_lea.sflag [#allocation7], %s242
        %s244 = sand.u32 %s137, 1
        %s245 = scalar_lea.vmem [#allocation6], %s244
        %p246 = scmp.lt.s32.totalorder %s25, 1
        %s247 = scalar_select %p246, %s25, 1
        %s248 = scalar_lea.vmem %s1, %s247
        %p249 = scmp.lt.s32.totalorder %s25, 1
        %s250 = scalar_select %p249, %s25, 1
        %s251 = scalar_lea.vmem %s2, %s250
        %v252 = vld [vmem:[%s211] sm:$0xf]
        %v253 = vld [vmem:[%s211 + $0x4] sm:$0xf]
        %vm254 = vcmask 1043456
        %v255 = vsel %vm254, %v252, 0.0
        %256 = vadd.xlane.f32.xlu0 %v255
        %v257 = vpop.xlane.xlu0 %256
        %v258 = vmul.f32 %v257, 0.0078125
        %v259 = vsel %vm254, %v253, 0.0
        %260 = vadd.xlane.f32.xlu0 %v259
        %v261 = vpop.xlane.xlu0 %260
        %v262 = vmul.f32 %v261, 0.0078125
        %v264 = vlaneseq
        %v265 = vand.u32 %v264, 127
        %v266 = vlaneseq
        %v267 = vshrl.u32 %v266, 7
        %v268 = vsub.s32 %v265, %v267
        %v269 = vrot.slane %v258, %v268
        %vm271 = vcmask 24576
        %272 = vst.msk [vmem:[%s239] sm:$0x1] %vm271, %v269
        %v274 = vlaneseq
        %v275 = vshrl.u32 %v274, 7
        %v276 = vsub.s32 %v265, %v275
        %v277 = vrot.slane %v262, %v276
        %279 = vst.msk [vmem:[%s239 + $0x1] sm:$0x1] %vm271, %v277
        %v280 = vld [vmem:[%s248] sm:$0x1]
        %v281 = vld [vmem:[%s251] sm:$0x1]
        %282 = vrot.lane.b32.xlu0 %v281, 1
        %v283 = vpop.permute.xlu0 %282
        %vm284 = vcmp.lt.s32.totalorder %v265, 0
        %v285 = vsub.s32 0, %v265
        %v286 = vsel %vm284, %v285, %v265
        %v287 = vshrl.u32 %v286, 3
        %v288 = vand.u32 %v286, 7
        %v289 = vsub.s32 0, %v288
        %v290 = vsel %vm284, %v289, %v288
        %vm291 = vcmp.ne.s32.totalorder %v290, 0
        %vm292 = vcmp.lt.s32.totalorder %v290, 0
        %vm293 = vmand %vm292, %vm291
        %v294 = vadd.s32 %v290, 8
        %v295 = vsel %vm293, %v294, %v290
        %vm296 = vcmp.eq.s32.totalorder %v295, 0
        %v297 = vsel %vm296, %v280, %v283
        %v298 = vmax.f32 %v280, %v281
        %v299 = vmax.f32 %v298, %v297
        %300 = vst [vmem:[%s245] sm:$0x1] %v299
        %s301 = sand.u32 %s111, 1
        %s302 = scalar_lea.sflag [#allocation4], %s301
        %s303 = sand.u32 %s111, 1
        %s304 = smul.addr %s303, 2
        %s305 = scalar_lea.vmem [#allocation5], %s304
        %s306 = sand.u32 %s137, 1
        %s307 = scalar_lea.sflag [#allocation7], %s306
        %s308 = sand.u32 %s137, 1
        %s309 = scalar_lea.vmem [#allocation6], %s308
        // Predicated region
        $region37: #{tpu_custom_call.1} parent=31 // pred_check
          %p310 = pneg %p121
        $region38: #{tpu_custom_call.1} parent=31 // pred_check_branch
          %312 = sbr.rel (%p310) target = $region40
        $region39: #{tpu_custom_call.1} parent=31 // pred_region
          %s314 = ssub.s32 32, 32
          %315 = vsyncadd %s302, %s314
          %s316 = smul.addr %s25, 32
          %s317 = scalar_lea.hbm %s3, %s316
          %s319 = sshll.u32 %s305, 4
          %s320 = int_to_ptr.vmem [resolvable:$true] %s319
          %322 = dma.vmem_to_hbm [thread:$0]  %s320, 32, %s317, %s302
        $region40: #{tpu_custom_call.1} parent=31 // pred_fallthru
          _
        // Predicated region
        $region41: #{tpu_custom_call.1} parent=31 // pred_check
          %p323 = pneg %p147
        $region42: #{tpu_custom_call.1} parent=31 // pred_check_branch
          %325 = sbr.rel (%p323) target = $region44
        $region43: #{tpu_custom_call.1} parent=31 // pred_region
          %s327 = ssub.s32 16, 16
          %328 = vsyncadd %s307, %s327
          %s329 = smul.addr %s25, 16
          %s330 = scalar_lea.hbm %s4, %s329
          %s332 = sshll.u32 %s309, 4
          %s333 = int_to_ptr.vmem [resolvable:$true] %s332
          %335 = dma.vmem_to_hbm [thread:$0]  %s333, 16, %s330, %s307
        $region44: #{tpu_custom_call.1} parent=31 // pred_fallthru
          _
      $region32: #{tpu_custom_call.1} parent=5 // pred_fallthru
        _
      %p336 = scmp.le.s32.totalorder 2, %s20
      // Predicated region
      $region45: #{tpu_custom_call.1} parent=5 // pred_check
        %p337 = pneg %p336
      $region46: #{tpu_custom_call.1} parent=5 // pred_check_branch
        %339 = sbr.rel (%p337) target = $region48
      $region47: #{tpu_custom_call.1} parent=5 // pred_region
        %s340 = ssub.s32 %s20, 2
        // Predicated region
        $region49: #{tpu_custom_call.1} parent=47 // pred_check
          %p341 = pneg %p127
        $region50: #{tpu_custom_call.1} parent=47 // pred_check_branch
          %343 = sbr.rel (%p341) target = $region52
        $region51: #{tpu_custom_call.1} parent=47 // pred_region
          %s344 = sand.u32 %s112, 1
          %s345 = scalar_lea.sflag [#allocation4], %s344
          %s346 = sand.u32 %s112, 1
          %s347 = smul.addr %s346, 2
          %s348 = scalar_lea.vmem [#allocation5], %s347
          %349 = dma.done %s345, 32
        $region52: #{tpu_custom_call.1} parent=47 // pred_fallthru
          _
        // Predicated region
        $region53: #{tpu_custom_call.1} parent=47 // pred_check
          %p350 = pneg %p153
        $region54: #{tpu_custom_call.1} parent=47 // pred_check_branch
          %352 = sbr.rel (%p350) target = $region56
        $region55: #{tpu_custom_call.1} parent=47 // pred_region
          %s353 = sand.u32 %s138, 1
          %s354 = scalar_lea.sflag [#allocation7], %s353
          %s355 = sand.u32 %s138, 1
          %s356 = scalar_lea.vmem [#allocation6], %s355
          %357 = dma.done %s354, 16
        $region56: #{tpu_custom_call.1} parent=47 // pred_fallthru
          _
      $region48: #{tpu_custom_call.1} parent=5 // pred_fallthru
        _
    $region6: #{tpu_custom_call.1} parent=1 // loop_footer
      %s24 = sadd.s32 1, %s20
    $region7: #{tpu_custom_call.1} parent=1 // loop_footer_branch
      %19 = sbr.rel target = $region3
    $region8: #{tpu_custom_call.1} parent=1 // loop_exit
      _
    %358 = vsyncpa [#allocation3], 1
    %s359 = scalar_lea.sflag [#allocation3], 1
    %360 = vsyncpa %s359, 1
    %361 = vsyncpa [#allocation4], 1
    %s362 = scalar_lea.sflag [#allocation4], 1
    %363 = vsyncpa %s362, 1
    %364 = vsyncpa [#allocation7], 1
    %s365 = scalar_lea.sflag [#allocation7], 1
    %366 = vsyncpa %s365, 1

</llo_original>
